<compile_context>
chip_gen: v5e
topology: v5e:2x2
jax: 0.10.0
libtpu: 0.0.40
codegen_flags: <defaults>
</compile_context>

<pallas_src>
import math
from functools import partial

import jax
import jax.numpy as jnp
from jax.experimental import pallas as pl
from jax.experimental.pallas import tpu as pltpu

_VMEM_LIMIT_BYTES = 32 * 1024 * 1024   # safe on v5e/v6e/v7x (v7x physical VMEM = 64 MiB)
_VMEM_TILE_BUDGET = 20 * 1024 * 1024   # target footprint for the attention tiles


def _pick_tile(dim, max_tile, step, min_steps=1):
    """Largest tile <= max_tile (multiple of `step`) dividing `dim`.

    Prefers >= min_steps grid steps when possible (megacore on v7x)."""
    limit = min(max_tile, dim // min_steps) if min_steps > 1 else max_tile
    if dim <= limit:
        return dim
    for cand in range((limit // step) * step, 0, -step):
        if dim % cand == 0:
            return cand
    # TODO(synk): ragged last tile not handled; fall back to a single full block.
    return dim


# ----------------------------------------------------------------------------- projections
def _proj_kernel(x_ref, w_ref, b_ref, o_ref, *, compute_dtype):
    acc = jnp.dot(x_ref[...].astype(compute_dtype), w_ref[...].astype(compute_dtype),
                  preferred_element_type=jnp.float32)
    o_ref[...] = (acc + b_ref[...]).astype(o_ref.dtype)


def _project(x2d, w, b, *, compute_dtype, tm_max=512):
    """Fused (M, E) @ (E, N) + b  ->  (M, N) f32, tiled over rows, computed ONCE."""
    M, E = x2d.shape
    N = w.shape[1]
    tm = _pick_tile(M, tm_max, 8)
    return pl.pallas_call(
        partial(_proj_kernel, compute_dtype=compute_dtype),
        out_shape=jax.ShapeDtypeStruct((M, N), jnp.float32),
        grid=(M // tm,),
        in_specs=[pl.BlockSpec((tm, E), lambda i: (i, 0)),
                  pl.BlockSpec((E, N), lambda i: (0, 0)),
                  pl.BlockSpec((1, N), lambda i: (0, 0))],
        out_specs=pl.BlockSpec((tm, N), lambda i: (i, 0)),
        compiler_params=pltpu.CompilerParams(
            dimension_semantics=("parallel",),
            vmem_limit_bytes=_VMEM_LIMIT_BYTES),
    )(x2d.astype(compute_dtype), w.astype(compute_dtype), b.astype(jnp.float32))


# ------------------------------------------------------------------------ attention core
def _attention_core_kernel(qxn_ref, kxn_ref, wp_ref, bp_ref, out_ref, score_ref, acc_ref,
                           *, n_head, compute_dtype):
    j = pl.program_id(1)
    n_j = pl.num_programs(1)
    N, tq, D = qxn_ref.shape            # N = n_head * batch, n = h*B + b (torch ordering)
    H = n_head
    B = N // H
    HD = H * D
    out_dim = out_ref.shape[-1]
    f32 = jnp.float32

    @pl.when(j == 0)
    def _init():
        acc_ref[...] = jnp.zeros_like(acc_ref)

    qx = qxn_ref[...].astype(compute_dtype)     # (N, tq, D); 1/sqrt(D) pre-folded into w_q
    kx = kxn_ref[...].astype(compute_dtype)     # (N, tk, D)

    # Scaled-dot-product scores for all heads/batches in one batched MXU contraction.
    s = jnp.einsum('nqd,nkd->nqk', qx, kx, preferred_element_type=f32)      # (N, tq, tk)

    # F.softmax(score, dim=0): normalize across the n = head*B + batch axis.
    # It is elementwise in (q, k), so tiling both Lq and Lk is legal.
    m = jnp.max(s, axis=0, keepdims=True)                                   # (1, tq, tk)
    e = jnp.exp(s - m)
    denom = jnp.sum(e, axis=0, keepdims=True)
    sc = e * pl.reciprocal(denom)               # exact: score is a returned tensor
    score_ref[...] = sc.astype(score_ref.dtype)

    # Attention-weighted values (value == kx, exactly as in the module), f32 accumulation.
    av = jnp.einsum('nqk,nkd->nqd', sc.astype(compute_dtype), kx,
                    preferred_element_type=f32)                             # (N, tq, D)

    # torch.cat(torch.split(output, B, dim=0), dim=-1): scatter each head's AV block to a
    # static lane offset of the (B, tq, H*D) accumulator (no concat/reshape copies).
    for h in range(H):
        acc_ref[:, :, h * D:(h + 1) * D] += av[h * B:(h + 1) * B]

    @pl.when(j == n_j - 1)
    def _finalize():
        o = acc_ref[...].reshape(B * tq, HD)
        proj = jnp.dot(o.astype(compute_dtype), wp_ref[...].astype(compute_dtype),
                       preferred_element_type=f32) + bp_ref[...]
        # TODO(synk): nn.Dropout(p=0.6) is identity here (inference/eval semantics).
        out_ref[...] = proj.reshape(B, tq, out_dim).astype(out_ref.dtype)


def attention_forward(k, q, params, *, n_head, hidden_dim, out_dim,
                      compute_dtype=jnp.float32, score_dtype=jnp.float32):
    if k.ndim == 2:
        k = k[:, None, :]
    if q.ndim == 2:
        q = q[:, None, :]
    B, Lk, E = k.shape
    _, Lq, _ = q.shape
    H, D = n_head, hidden_dim
    HD = H * D
    N = H * B
    inv_sqrt_d = 1.0 / math.sqrt(D)

    # Fold 1/sqrt(D) into the q projection (free; removes per-score VPU multiplies).
    wq_s = params['wq'] * inv_sqrt_d
    bq_s = params['bq'] * inv_sqrt_d

    # Hoisted projections: each computed exactly once (not once per grid step).
    kx = _project(k.reshape(B * Lk, E), params['wk'], params['bk'], compute_dtype=compute_dtype)
    qx = _project(q.reshape(B * Lq, E), wq_s, bq_s, compute_dtype=compute_dtype)

    # (B*L, H*D) -> (H*B, L, D) with n = h*B + b, matching kx.permute(2,0,1,3).view(...).
    kxn = kx.reshape(B, Lk, H, D).transpose(2, 0, 1, 3).reshape(N, Lk, D).astype(compute_dtype)
    qxn = qx.reshape(B, Lq, H, D).transpose(2, 0, 1, 3).reshape(N, Lq, D).astype(compute_dtype)

    wp = params['wp'].astype(compute_dtype)
    bp = params['bp'].astype(jnp.float32)

    cd_size = jnp.dtype(compute_dtype).itemsize
    sc_size = jnp.dtype(score_dtype).itemsize

    # Tile sizing from a VMEM budget (double-buffered inputs/outputs + f32 temps).
    max_tq, max_tk = 256, 512
    tq = _pick_tile(Lq, max_tq, 8, min_steps=2)      # >=2 Lq steps when possible (v7x megacore)
    tk = _pick_tile(Lk, max_tk, 128)                 # 128-aligned -> lane-dense score stores

    def _vmem_estimate(tq_, tk_):
        return (2 * N * tq_ * tk_ * sc_size          # score output tile (double-buffered)
                + 2 * N * tq_ * D * cd_size          # qx tile
                + 2 * N * tk_ * D * cd_size          # kx tile
                + B * tq_ * HD * 4                   # f32 AV accumulator scratch
                + 2 * B * tq_ * out_dim * 4          # out tile
                + 2 * (HD * out_dim + out_dim) * cd_size
                + 8 * N * tq_ * tk_)                 # in-kernel f32 temps (s, e)

    for _ in range(8):
        if _vmem_estimate(tq, tk) <= _VMEM_TILE_BUDGET:
            break
        if tk > 128 and max_tk > 128:
            max_tk = max(128, max_tk // 2)
            tk = _pick_tile(Lk, max_tk, 128)
        elif max_tq > 8:
            max_tq = max(8, max_tq // 2)
            tq = _pick_tile(Lq, max_tq, 8, min_steps=2)
        else:
            break

    grid = (Lq // tq, Lk // tk)

    flops = 4 * N * Lq * Lk * D + 2 * B * Lq * HD * out_dim
    bytes_accessed = int(qxn.nbytes + kxn.nbytes + wp.nbytes + bp.nbytes
                         + 4 * B * Lq * out_dim + sc_size * N * Lq * Lk)
    cost = pl.CostEstimate(flops=flops, transcendentals=N * Lq * Lk,
                           bytes_accessed=bytes_accessed)

    kernel = partial(_attention_core_kernel, n_head=H, compute_dtype=compute_dtype)

    out, score = pl.pallas_call(
        kernel,
        out_shape=(jax.ShapeDtypeStruct((B, Lq, out_dim), jnp.float32),
                   jax.ShapeDtypeStruct((N, Lq, Lk), score_dtype)),
        grid=grid,
        in_specs=[
            pl.BlockSpec((N, tq, D), lambda i, j: (0, i, 0)),        # qx: tiled over Lq
            pl.BlockSpec((N, tk, D), lambda i, j: (0, j, 0)),        # kx: tiled over Lk
            pl.BlockSpec((HD, out_dim), lambda i, j: (0, 0)),        # wp: resident
            pl.BlockSpec((1, out_dim), lambda i, j: (0, 0)),         # bp: resident
        ],
        out_specs=(
            pl.BlockSpec((B, tq, out_dim), lambda i, j: (0, i, 0)),  # written at last Lk step
            pl.BlockSpec((N, tq, tk), lambda i, j: (0, i, j)),
        ),
        scratch_shapes=[pltpu.VMEM((B, tq, HD), jnp.float32)],       # f32 AV accumulator
        compiler_params=pltpu.CompilerParams(
            dimension_semantics=("parallel", "arbitrary"),
            vmem_limit_bytes=_VMEM_LIMIT_BYTES),
        cost_estimate=cost,
    )(qxn, kxn, wp, bp)

    return out, score            # score already (H*B, Lq, Lk) with n = h*B + b


# ----------------------------------------------------------------------------- reference
def attention_reference(k, q, params, *, n_head, hidden_dim, out_dim):
    """Pure-JAX mirror of the PyTorch forward (for verification)."""
    B, Lk, _ = k.shape
    _, Lq, _ = q.shape
    H, D = n_head, hidden_dim
    hp = jax.lax.Precision.HIGHEST
    kx = jnp.einsum('ble,ef->blf', k, params['wk'], precision=hp) + params['bk']
    qx = jnp.einsum('ble,ef->blf', q, params['wq'], precision=hp) + params['bq']
    kx = kx.reshape(B, Lk, H, D).transpose(2, 0, 1, 3).reshape(H * B, Lk, D)
    qx = qx.reshape(B, Lq, H, D).transpose(2, 0, 1, 3).reshape(H * B, Lq, D)
    score = jnp.einsum('nqd,nkd->nqk', qx, kx, precision=hp) / math.sqrt(D)
    score = jax.nn.softmax(score, axis=0)                       # dim=0, as in the module
    output = jnp.einsum('nqk,nkd->nqd', score, kx, precision=hp)
    output = jnp.concatenate(jnp.split(output, H, axis=0), axis=-1)   # (B, Lq, H*D)
    output = jnp.einsum('blf,fo->blo', output, params['wp'], precision=hp) + params['bp']
    return output, score


if __name__ == "__main__":
    # Small shapes: batch=2, k_len=q_len=8, embed_dim=32, n_head=4 -> hidden_dim=8
    B, Lk, Lq = 2, 8, 8
    E, H = 32, 4
    D = E // H
    OUT = E

    key = jax.random.PRNGKey(0)
    ks = jax.random.split(key, 8)
    s_in = 1.0 / math.sqrt(E)
    s_hd = 1.0 / math.sqrt(H * D)
    params = {
        'wk': jax.random.uniform(ks[0], (E, H * D), jnp.float32, -s_in, s_in),
        'bk': jax.random.uniform(ks[1], (1, H * D), jnp.float32, -s_in, s_in),
        'wq': jax.random.uniform(ks[2], (E, H * D), jnp.float32, -s_in, s_in),
        'bq': jax.random.uniform(ks[3], (1, H * D), jnp.float32, -s_in, s_in),
        'wp': jax.random.uniform(ks[4], (H * D, OUT), jnp.float32, -s_hd, s_hd),
        'bp': jax.random.uniform(ks[5], (1, OUT), jnp.float32, -s_hd, s_hd),
    }
    k = jax.random.normal(ks[6], (B, Lk, E), jnp.float32)
    q = jax.random.normal(ks[7], (B, Lq, E), jnp.float32)

    out_want, score_want = attention_reference(k, q, params, n_head=H, hidden_dim=D, out_dim=OUT)

    # f32 path (tight tolerance)
    out, score = attention_forward(k, q, params, n_head=H, hidden_dim=D, out_dim=OUT,
                                   compute_dtype=jnp.float32, score_dtype=jnp.float32)
    jax.block_until_ready((out, score))
    assert out.shape == (B, Lq, OUT) and score.shape == (H * B, Lq, Lk)
    assert jnp.allclose(score, score_want, atol=2e-3, rtol=2e-3), "score mismatch (f32)"
    assert jnp.allclose(out, out_want, atol=2e-3, rtol=2e-3), "output mismatch (f32)"

    # bf16-operand / f32-accumulate path with bf16 score writeback (loose tolerance)
    out_bf, score_bf = attention_forward(k, q, params, n_head=H, hidden_dim=D, out_dim=OUT,
                                         compute_dtype=jnp.bfloat16, score_dtype=jnp.bfloat16)
    jax.block_until_ready((out_bf, score_bf))
    assert jnp.allclose(score_bf.astype(jnp.float32), score_want,
                        atol=1e-1, rtol=1e-1), "score mismatch (bf16)"
    assert jnp.allclose(out_bf, out_want, atol=1e-1, rtol=1e-1), "output mismatch (bf16)"

    print("KERNEL_OK")
</pallas_src>

<mosaic_0001>
module attributes {stable_mosaic.version = 11 : i64} {
  func.func @_proj_kernel(%arg0: i32, %arg1: memref<16x32xf32, #tpu.memory_space<vmem>>, %arg2: memref<32x32xf32, #tpu.memory_space<vmem>>, %arg3: memref<1x32xf32, #tpu.memory_space<vmem>>, %arg4: memref<16x32xf32, #tpu.memory_space<vmem>>) attributes {dimension_semantics = [#tpu.dimension_semantics<parallel>], iteration_bounds = array<i64: 1>, scalar_prefetch = 0 : i64, scratch_operands = 0 : i64, tpu.core_type = #tpu.core_type<tc>, window_params = [{transform_indices = @transform_0, window_bounds = array<i64: 16, 32>}, {pipeline_mode = #tpu.pipeline_mode<synchronous>, transform_indices = @transform_1, window_bounds = array<i64: 32, 32>}, {pipeline_mode = #tpu.pipeline_mode<synchronous>, transform_indices = @transform_2, window_bounds = array<i64: 1, 32>}, {transform_indices = @transform_3, window_bounds = array<i64: 16, 32>}]} {
    %c0 = arith.constant 0 : index
    %c0_0 = arith.constant 0 : index
    %0 = vector.load %arg1[%c0, %c0_0] : memref<16x32xf32, #tpu.memory_space<vmem>>, vector<16x32xf32>
    %c0_1 = arith.constant 0 : index
    %c0_2 = arith.constant 0 : index
    %1 = vector.load %arg2[%c0_1, %c0_2] : memref<32x32xf32, #tpu.memory_space<vmem>>, vector<32x32xf32>
    %cst = arith.constant dense<0.000000e+00> : vector<16x32xf32>
    %2 = tpu.matmul %0, %1, %cst {dimension_numbers = #tpu.dot_dimension_numbers<[1], [0], [0], [1], [0, 0, 1, 1], [], []>} : vector<16x32xf32>, vector<32x32xf32>, vector<16x32xf32> -> vector<16x32xf32>
    %c0_3 = arith.constant 0 : index
    %c0_4 = arith.constant 0 : index
    %3 = vector.load %arg3[%c0_3, %c0_4] : memref<1x32xf32, #tpu.memory_space<vmem>>, vector<1x32xf32>
    %4 = vector.broadcast %3 : vector<1x32xf32> to vector<16x32xf32>
    %5 = arith.addf %2, %4 : vector<16x32xf32>
    %c0_5 = arith.constant 0 : index
    %c0_6 = arith.constant 0 : index
    %6 = vector.load %arg4[%c0_5, %c0_6] : memref<16x32xf32, #tpu.memory_space<vmem>>, vector<16x32xf32>
    tpu.vector_store %arg4[%c0_5, %c0_6], %5 {strides = array<i32>} : memref<16x32xf32, #tpu.memory_space<vmem>>, vector<16x32xf32>,
    return
  }
  func.func @transform_0(%arg0: i32) -> (i32, i32) {
    %c0_i32 = arith.constant 0 : i32
    %c0_i32_0 = arith.constant 0 : i32
    return %arg0, %c0_i32 : i32, i32
  }
  func.func @transform_1(%arg0: i32) -> (i32, i32) {
    %c0_i32 = arith.constant 0 : i32
    %c0_i32_0 = arith.constant 0 : i32
    %c0_i32_1 = arith.constant 0 : i32
    return %c0_i32, %c0_i32_0 : i32, i32
  }
  func.func @transform_2(%arg0: i32) -> (i32, i32) {
    %c0_i32 = arith.constant 0 : i32
    %c0_i32_0 = arith.constant 0 : i32
    %c0_i32_1 = arith.constant 0 : i32
    return %c0_i32, %c0_i32_0 : i32, i32
  }
  func.func @transform_3(%arg0: i32) -> (i32, i32) {
    %c0_i32 = arith.constant 0 : i32
    %c0_i32_0 = arith.constant 0 : i32
    return %arg0, %c0_i32 : i32, i32
  }
}

</mosaic_0001>

<llo_original>
// kernel: tpu_custom_call.1
$region0: #{tpu_custom_call.1}
  #allocation0 [shape = 'u32[]', space=smem, size = 0x4, offset = 0x4, fixed_abs, tag = 'smem constant byte address 0x4 - core index']
  #allocation1 [shape = 'u32[72,128]{1,0:T(1,128)}', space=vmem, size = 0x9000, scoped, tag = 'internal scratch']
  %s0 = inlined_call_operand.hbm [shape: f32[16,32], index: 0, kind: input, shape index: {}]
  %s1 = inlined_call_operand.hbm [shape: f32[32,32], index: 1, kind: input, shape index: {}]
  %s2 = inlined_call_operand.vmem [shape: f32[1,32], index: 2, kind: input, shape index: {}]
  %s3 = inlined_call_operand.hbm [shape: f32[16,32], index: 3, kind: output, shape index: {}]
  %s4 = sld [smem:[#allocation0]]
  $region30: #{tpu_custom_call.1} parent=0
    _
  %s6 = ssub.s32 1, %s4
  %s7 = scalar_select 0, %s6, %s4
  $region1: #{tpu_custom_call.1} parent=0
    #allocation2 [shape = 'u8[8192]{0}', space=vmem, size = 0x2000, scoped, tag = 'input window, operand 0, single buffered']
    #allocation3 [shape = 's32[1]{0}', space=sflag, size = 0x4, scoped, tag = 'scoped memory for tpu_custom_call.1']
    #allocation4 [shape = 's32[1]{0}', space=sflag, size = 0x4, scoped, tag = 'scoped memory for tpu_custom_call.1']
    #allocation5 [shape = 'u8[16384]{0}', space=vmem, size = 0x4000, scoped, tag = 'input window, operand 1, single buffered']
    #allocation6 [shape = 's32[1]{0}', space=sflag, size = 0x4, scoped, tag = 'scoped memory for tpu_custom_call.1']
    #allocation7 [shape = 'u8[8192]{0}', space=vmem, size = 0x2000, scoped, tag = 'output window, operand 0, single buffered']
    %8 = vsyncpa [#allocation3], 0
    %9 = vsyncpa [#allocation6], 0
    %10 = vsyncpa [#allocation4], 0
    // Predicated region
    $region2: #{tpu_custom_call.1} parent=1 // pred_check
      _
    $region3: #{tpu_custom_call.1} parent=1 // pred_check_branch
      %12 = sbr.rel (0) target = $region5
    $region4: #{tpu_custom_call.1} parent=1 // pred_region
      %14 = vsyncadd [#allocation3], 0
      %s15 = sshll.u32 %s0, 4
      %s16 = int_to_ptr.hbm [resolvable:$true] %s15
      %s17 = sshll.u32 [#allocation2], 4
      %s18 = int_to_ptr.vmem [resolvable:$true] %s17
      %23 = dma.hbm_to_vmem [thread:$0]  %s16, 256, %s18, [#allocation3], 128, 128, 8
    $region5: #{tpu_custom_call.1} parent=1 // pred_fallthru
      _
    // Predicated region
    $region6: #{tpu_custom_call.1} parent=1 // pred_check
      _
    $region7: #{tpu_custom_call.1} parent=1 // pred_check_branch
      %25 = sbr.rel (0) target = $region9
    $region8: #{tpu_custom_call.1} parent=1 // pred_region
      %27 = vsyncadd [#allocation6], 0
      %s28 = sshll.u32 %s1, 4
      %s29 = int_to_ptr.hbm [resolvable:$true] %s28
      %s30 = sshll.u32 [#allocation5], 4
      %s31 = int_to_ptr.vmem [resolvable:$true] %s30
      %36 = dma.hbm_to_vmem [thread:$0]  %s29, 512, %s31, [#allocation6], 128, 128, 8
    $region9: #{tpu_custom_call.1} parent=1 // pred_fallthru
      _
    // Predicated region
    $region10: #{tpu_custom_call.1} parent=1 // pred_check
      _
    $region11: #{tpu_custom_call.1} parent=1 // pred_check_branch
      %38 = sbr.rel (0) target = $region13
    $region12: #{tpu_custom_call.1} parent=1 // pred_region
      _
    $region13: #{tpu_custom_call.1} parent=1 // pred_fallthru
      _
    // Predicated region
    $region14: #{tpu_custom_call.1} parent=1 // pred_check
      _
    $region15: #{tpu_custom_call.1} parent=1 // pred_check_branch
      %40 = sbr.rel (0) target = $region17
    $region16: #{tpu_custom_call.1} parent=1 // pred_region
      %42 = dma.done [#allocation3], 256
    $region17: #{tpu_custom_call.1} parent=1 // pred_fallthru
      _
    // Predicated region
    $region18: #{tpu_custom_call.1} parent=1 // pred_check
      _
    $region19: #{tpu_custom_call.1} parent=1 // pred_check_branch
      %44 = sbr.rel (0) target = $region21
    $region20: #{tpu_custom_call.1} parent=1 // pred_region
      %46 = dma.done [#allocation6], 512
    $region21: #{tpu_custom_call.1} parent=1 // pred_fallthru
      _
    %v47 = vld [vmem:[#allocation2] sm:$0xff]
    %v48 = vld [vmem:[#allocation2 + $0x8] sm:$0xff]
    %v49 = vld [vmem:[#allocation5] sm:$0xff]
    %v50 = vld [vmem:[#allocation5 + $0x8] sm:$0xff]
    %v51 = vld [vmem:[#allocation5 + $0x10] sm:$0xff]
    %v52 = vld [vmem:[#allocation5 + $0x18] sm:$0xff]
    %v53 = vld [vmem:[%s2] sm:$0x1]
    %v55 = vperm.slane %v53, 0
    %vm57 = vcmask 261120
    %v59 = vsel %vm57, %v47, 0
    %v62 = vsel %vm57, %v48, 0
    %64 = vmatpush.msra.mxu0 0.0
    %65 = vmatpush.msra.mxu0 0.0
    %66 = vmatpush.msra.mxu0 0.0
    %67 = vmatpush.msra.mxu0 0.0
    %68 = vmatpush.msra.mxu0 0.0
    %69 = vmatpush.msra.mxu0 0.0
    %70 = vmatpush.msra.mxu0 0.0
    %71 = vmatpush.msra.mxu0 0.0
    %72 = vmatpush.msra.mxu0 0.0
    %73 = vmatpush.msra.mxu0 0.0
    %74 = vmatpush.msra.mxu0 0.0
    %75 = vmatpush.msra.mxu0 0.0
    %76 = vmatpush.msra.mxu0 %v52
    %77 = vmatpush.msra.mxu0 %v51
    %78 = vmatpush.msra.mxu0 %v50
    %79 = vmatpush.msra.mxu0 %v49
    %80 = vmatmul.f32.gmra.mxu0 %v59
    %v81 = vpop.f32.mrf.mxu0
    %v82 = vadd.f32 %v55, %v81
    %83 = vmatmul.f32.gmra.mxu0 %v62
    %v84 = vpop.f32.mrf.mxu0
    %v85 = vadd.f32 %v55, %v84
    %86 = vdwg.mxu0
    %87 = vst.msk [vmem:[#allocation7] sm:$0xff] %vm57, %v82
    %88 = vst.msk [vmem:[#allocation7 + $0x8] sm:$0xff] %vm57, %v85
    // Predicated region
    $region22: #{tpu_custom_call.1} parent=1 // pred_check
      _
    $region23: #{tpu_custom_call.1} parent=1 // pred_check_branch
      %90 = sbr.rel (0) target = $region25
    $region24: #{tpu_custom_call.1} parent=1 // pred_region
      %92 = vsyncadd [#allocation4], 0
      %s93 = sshll.u32 [#allocation7], 4
      %s94 = int_to_ptr.vmem [resolvable:$true] %s93
      %s95 = sshll.u32 %s3, 4
      %s96 = int_to_ptr.hbm [resolvable:$true] %s95
      %101 = dma.vmem_to_hbm [thread:$0]  %s94, 256, %s96, [#allocation4], 128, 128, 8
    $region25: #{tpu_custom_call.1} parent=1 // pred_fallthru
      _
    // Predicated region
    $region26: #{tpu_custom_call.1} parent=1 // pred_check
      _
    $region27: #{tpu_custom_call.1} parent=1 // pred_check_branch
      %103 = sbr.rel (0) target = $region29
    $region28: #{tpu_custom_call.1} parent=1 // pred_region
      %105 = dma.done [#allocation4], 256
    $region29: #{tpu_custom_call.1} parent=1 // pred_fallthru
      _
    %106 = vsyncpa [#allocation3], 1
    %107 = vsyncpa [#allocation6], 1
    %108 = vsyncpa [#allocation4], 1

</llo_original>
